<compile_context>
chip_gen: v7x
topology: tpu7x:2x2x1
jax: 0.10.0
libtpu: 0.0.40
codegen_flags: <defaults>
</compile_context>

<pallas_src>
import functools

import jax
import jax.numpy as jnp
from jax.experimental import pallas as pl
from jax.experimental.pallas import tpu as pltpu

_LANE = 128


def _num_tensorcores():
    """Best-effort TensorCore count (2 on v7x, 1 on v5e/v6e); safe fallback."""
    try:
        info = pltpu.get_tpu_info()
        for attr in ("num_cores", "tensorcore_count", "core_count", "num_tensorcores"):
            v = getattr(info, attr, None)
            if isinstance(v, int) and v > 0:
                return v
    except Exception:
        pass
    return 2


def _focal_loss_kernel(pred_ref, comb_ref, out_ref, *, alpha, gamma):
    i = pl.program_id(1)

    @pl.when(i == 0)
    def _():
        out_ref[...] = jnp.zeros_like(out_ref)

    x = pred_ref[...].astype(jnp.float32)        # (bm, 128) logits
    c = comb_ref[...].astype(jnp.float32)        # (bm, 128) {-1: ignored/pad, 0, 1}
    y = jnp.maximum(c, 0.0)                      # hard label in {0, 1}

    # Numerically stable BCE-with-logits.  For hard labels bce == -log(p_t)
    # exactly, so p_t = exp(-bce): one extra EUP exp replaces the whole
    # sigmoid / reciprocal / select / p_t VALU chain.
    e = jnp.exp(-jnp.abs(x))
    bce = jnp.maximum(x, 0.0) - x * y + jnp.log1p(e)
    one_minus_pt = 1.0 - jnp.exp(-bce)

    if gamma:  # static Python conditional, mirrors the reference
        if float(gamma) == 2.0:
            mod = one_minus_pt * one_minus_pt    # avoid pow (= log+exp on EUP)
        else:
            mod = jnp.power(one_minus_pt, jnp.float32(gamma))
    else:
        mod = jnp.float32(1.0)

    if alpha is not None:
        # labels*alpha + (1-labels)*(1-alpha) == (1-alpha) + (2*alpha-1)*y
        aw = jnp.float32(1.0 - alpha) + jnp.float32(2.0 * alpha - 1.0) * y
    else:
        aw = jnp.float32(1.0)

    # Mask ignored anchors (and -1 padding) in one select.
    focal = jnp.where(c >= 0.0, mod * aw * bce, 0.0)

    bm = focal.shape[0]
    # Fold into the resident (8, 128) accumulator: pure VPU vreg adds per step.
    out_ref[...] += focal.reshape(bm // 8, 8, _LANE).sum(axis=0)


def focal_loss(labels, pred, anchor_state, alpha=0.25, gamma=2.0,
               block_rows=2048, core_splits=None):
    """labels, pred: (N, C); anchor_state: (N,) in {-1, 0, 1}. Returns scalar loss."""
    N, C = pred.shape
    total = N * C

    if core_splits is None:
        core_splits = _num_tensorcores()

    # --- plain-JAX pieces: normalizer + lane-dense repacking (layout plumbing) ---
    normalizer = jnp.maximum(jnp.sum((anchor_state == 1).astype(jnp.float32)), 1.0)

    # Combined label/valid stream, int8 values {-1 (ignored), 0, 1}.
    valid = (anchor_state != -1)[:, None]                         # (N, 1) bool
    combined = jnp.where(valid, labels, -1.0).astype(jnp.int8)    # (N, C)

    pred_flat = pred.reshape(-1)                                  # keep upstream dtype
    comb_flat = combined.reshape(-1)

    rows_min = -(-total // _LANE)                                 # cdiv(total, 128)
    per_core = -(-rows_min // core_splits)
    bm = min(block_rows, per_core)
    bm = max(32, ((bm + 31) // 32) * 32)                          # int8 tiles need 32-row align
    steps = -(-per_core // bm)
    rows = core_splits * steps * bm
    pad = rows * _LANE - total
    if pad:
        pred_flat = jnp.pad(pred_flat, (0, pad))                  # value irrelevant (masked)
        comb_flat = jnp.pad(comb_flat, (0, pad), constant_values=-1)   # -1 => masked padding

    pred2 = pred_flat.reshape(rows, _LANE)
    comb2 = comb_flat.reshape(rows, _LANE)

    kernel = functools.partial(_focal_loss_kernel, alpha=alpha, gamma=gamma)

    row_map = lambda c, i: (c * steps + i, 0)
    partials = pl.pallas_call(
        kernel,
        out_shape=jax.ShapeDtypeStruct((core_splits * 8, _LANE), jnp.float32),
        grid_spec=pl.GridSpec(
            grid=(core_splits, steps),
            in_specs=[
                pl.BlockSpec((bm, _LANE), row_map),   # pred (logits), upstream dtype
                pl.BlockSpec((bm, _LANE), row_map),   # combined labels/mask, int8
            ],
            out_specs=pl.BlockSpec((8, _LANE), lambda c, i: (c, 0)),
        ),
        compiler_params=pltpu.CompilerParams(
            dimension_semantics=("parallel", "arbitrary")),
    )(pred2, comb2)

    # Single cross-lane reduction + divide, outside the kernel.
    return jnp.sum(partials) / normalizer


def _focal_loss_ref(labels, pred, anchor_state, alpha=0.25, gamma=2.0):
    """Pure-JAX reference mirroring the PyTorch code (mask instead of gather)."""
    valid = (anchor_state != -1).astype(jnp.float32)[:, None]
    bce = (jnp.maximum(pred, 0.0) - pred * labels
           + jnp.log1p(jnp.exp(-jnp.abs(pred))))
    prob = jax.nn.sigmoid(pred)
    p_t = labels * prob + (1 - labels) * (1 - prob)
    mod = jnp.power(1.0 - p_t, gamma)
    aw = labels * alpha + (1 - labels) * (1 - alpha)
    loss = mod * aw * bce * valid
    normalizer = jnp.maximum(jnp.sum((anchor_state == 1).astype(jnp.float32)), 1.0)
    return jnp.sum(loss) / normalizer


if __name__ == "__main__":
    key = jax.random.PRNGKey(0)
    k1, k2, k3 = jax.random.split(key, 3)

    N, C = 256, 8  # num_anchors, num_classes
    pred = jax.random.normal(k1, (N, C), dtype=jnp.float32) * 2.0
    labels = (jax.random.uniform(k2, (N, C)) > 0.8).astype(jnp.float32)
    # anchor_state in {-1 (ignore), 0 (background), 1 (positive)}
    anchor_state = jax.random.randint(k3, (N,), -1, 2).astype(jnp.int32)

    loss = focal_loss(labels, pred, anchor_state, alpha=0.25, gamma=2.0)
    loss = jax.block_until_ready(loss)

    ref = _focal_loss_ref(labels, pred, anchor_state)
    assert jnp.allclose(loss, ref, rtol=1e-4, atol=1e-5), (loss, ref)

    print("KERNEL_OK")
</pallas_src>

<mosaic_0001>
module attributes {stable_mosaic.version = 11 : i64} {
  func.func @_focal_loss_kernel(%arg0: i32, %arg1: i32, %arg2: memref<32x128xf32, #tpu.memory_space<vmem>>, %arg3: memref<32x128xi8, #tpu.memory_space<vmem>>, %arg4: memref<8x128xf32, #tpu.memory_space<vmem>>) attributes {dimension_semantics = [#tpu.dimension_semantics<parallel>, #tpu.dimension_semantics<arbitrary>], iteration_bounds = array<i64: 2, 1>, scalar_prefetch = 0 : i64, scratch_operands = 0 : i64, tpu.core_type = #tpu.core_type<tc>, window_params = [{transform_indices = @transform_0, window_bounds = array<i64: 32, 128>}, {transform_indices = @transform_1, window_bounds = array<i64: 32, 128>}, {transform_indices = @transform_2, window_bounds = array<i64: 8, 128>}]} {
    %c0_i32 = arith.constant 0 : i32
    %0 = arith.cmpi eq, %arg1, %c0_i32 : i32
    %1 = arith.extui %0 : i1 to i32
    %c0_i32_0 = arith.constant 0 : i32
    %2 = arith.cmpi ne, %1, %c0_i32_0 : i32
    scf.if %2 {
      %cst_17 = arith.constant 0.000000e+00 : f32
      %39 = vector.broadcast %cst_17 : f32 to vector<8x128xf32>
      %c0_18 = arith.constant 0 : index
      %c0_19 = arith.constant 0 : index
      %40 = vector.load %arg4[%c0_18, %c0_19] : memref<8x128xf32, #tpu.memory_space<vmem>>, vector<8x128xf32>
      tpu.vector_store %arg4[%c0_18, %c0_19], %39 {strides = array<i32>} : memref<8x128xf32, #tpu.memory_space<vmem>>, vector<8x128xf32>,
    } else {
    }
    %c0 = arith.constant 0 : index
    %c0_1 = arith.constant 0 : index
    %3 = vector.load %arg2[%c0, %c0_1] : memref<32x128xf32, #tpu.memory_space<vmem>>, vector<32x128xf32>
    %c0_2 = arith.constant 0 : index
    %c0_3 = arith.constant 0 : index
    %4 = vector.load %arg3[%c0_2, %c0_3] : memref<32x128xi8, #tpu.memory_space<vmem>>, vector<32x128xi8>
    %5 = arith.sitofp %4 : vector<32x128xi8> to vector<32x128xf32>
    %cst = arith.constant 0.000000e+00 : f32
    %6 = vector.broadcast %cst : f32 to vector<32x128xf32>
    %7 = arith.maximumf %5, %6 : vector<32x128xf32>
    %8 = math.absf %3 : vector<32x128xf32>
    %cst_4 = arith.constant 0.000000e+00 : f32
    %9 = vector.broadcast %cst_4 : f32 to vector<32x128xf32>
    %10 = arith.subf %9, %8 : vector<32x128xf32>
    %11 = math.exp %10 : vector<32x128xf32>
    %cst_5 = arith.constant 0.000000e+00 : f32
    %12 = vector.broadcast %cst_5 : f32 to vector<32x128xf32>
    %13 = arith.maximumf %3, %12 : vector<32x128xf32>
    %14 = arith.mulf %3, %7 : vector<32x128xf32>
    %15 = arith.subf %13, %14 : vector<32x128xf32>
    %16 = math.log1p %11 : vector<32x128xf32>
    %17 = arith.addf %15, %16 : vector<32x128xf32>
    %cst_6 = arith.constant 0.000000e+00 : f32
    %18 = vector.broadcast %cst_6 : f32 to vector<32x128xf32>
    %19 = arith.subf %18, %17 : vector<32x128xf32>
    %20 = math.exp %19 : vector<32x128xf32>
    %cst_7 = arith.constant 1.000000e+00 : f32
    %21 = vector.broadcast %cst_7 : f32 to vector<32x128xf32>
    %22 = arith.subf %21, %20 : vector<32x128xf32>
    %23 = arith.mulf %22, %22 : vector<32x128xf32>
    %cst_8 = arith.constant -5.000000e-01 : f32
    %24 = vector.broadcast %cst_8 : f32 to vector<32x128xf32>
    %25 = arith.mulf %24, %7 : vector<32x128xf32>
    %cst_9 = arith.constant 7.500000e-01 : f32
    %26 = vector.broadcast %cst_9 : f32 to vector<32x128xf32>
    %27 = arith.addf %26, %25 : vector<32x128xf32>
    %cst_10 = arith.constant 0.000000e+00 : f32
    %28 = vector.broadcast %cst_10 : f32 to vector<32x128xf32>
    %29 = arith.cmpf oge, %5, %28 : vector<32x128xf32>
    %30 = arith.mulf %23, %27 : vector<32x128xf32>
    %31 = arith.mulf %30, %17 : vector<32x128xf32>
    %cst_11 = arith.constant 0.000000e+00 : f32
    %32 = vector.broadcast %cst_11 : f32 to vector<32x128xf32>
    %33 = arith.select %29, %31, %32 : vector<32x128xi1>, vector<32x128xf32>
    %c0_12 = arith.constant 0 : index
    %c0_13 = arith.constant 0 : index
    %34 = vector.load %arg4[%c0_12, %c0_13] : memref<8x128xf32, #tpu.memory_space<vmem>>, vector<8x128xf32>
    %35 = vector.shape_cast %33 : vector<32x128xf32> to vector<4x8x128xf32>
    %cst_14 = arith.constant dense<0.000000e+00> : vector<8x128xf32>
    %36 = vector.multi_reduction <add>, %35, %cst_14 [0] : vector<4x8x128xf32> to vector<8x128xf32>
    %37 = arith.addf %34, %36 : vector<8x128xf32>
    %c0_15 = arith.constant 0 : index
    %c0_16 = arith.constant 0 : index
    %38 = vector.load %arg4[%c0_15, %c0_16] : memref<8x128xf32, #tpu.memory_space<vmem>>, vector<8x128xf32>
    tpu.vector_store %arg4[%c0_15, %c0_16], %37 {strides = array<i32>} : memref<8x128xf32, #tpu.memory_space<vmem>>, vector<8x128xf32>,
    return
  }
  func.func @transform_0(%arg0: i32, %arg1: i32) -> (i32, i32) {
    %c1_i32 = arith.constant 1 : i32
    %0 = arith.muli %arg0, %c1_i32 : i32
    %1 = arith.addi %0, %arg1 : i32
    %c0_i32 = arith.constant 0 : i32
    %c0_i32_0 = arith.constant 0 : i32
    return %1, %c0_i32 : i32, i32
  }
  func.func @transform_1(%arg0: i32, %arg1: i32) -> (i32, i32) {
    %c1_i32 = arith.constant 1 : i32
    %0 = arith.muli %arg0, %c1_i32 : i32
    %1 = arith.addi %0, %arg1 : i32
    %c0_i32 = arith.constant 0 : i32
    %c0_i32_0 = arith.constant 0 : i32
    return %1, %c0_i32 : i32, i32
  }
  func.func @transform_2(%arg0: i32, %arg1: i32) -> (i32, i32) {
    %c0_i32 = arith.constant 0 : i32
    %c0_i32_0 = arith.constant 0 : i32
    return %arg0, %c0_i32 : i32, i32
  }
}

</mosaic_0001>

<llo_original>
// kernel: tpu_custom_call.1
$region0: #{tpu_custom_call.1}
  #allocation0 [shape = 'u32[]', space=smem, size = 0x4, offset = 0x4, fixed_abs, tag = 'smem constant byte address 0x4 - core index']
  #allocation1 [shape = 'u32[144,128]{1,0:T(1,128)}', space=vmem, size = 0x12000, scoped, tag = 'internal scratch']
  %s0 = inlined_call_operand.hbm [shape: f32[64,128], index: 0, kind: input, shape index: {}]
  %s1 = inlined_call_operand.hbm [shape: s8[64,128], index: 1, kind: input, shape index: {}]
  %s2 = inlined_call_operand.hbm [shape: f32[16,128], index: 2, kind: output, shape index: {}]
  %s3 = sld [smem:[#allocation0]]
  $region53: #{tpu_custom_call.1} parent=0
    _
  %s5 = ssub.s32 1, %s3
  %s6 = scalar_select 0, %s5, %s3
  $region1: #{tpu_custom_call.1} parent=0
    #allocation2 [shape = 'u8[32768]{0}', space=vmem, size = 0x8000, scoped, tag = 'input window, operand 0']
    #allocation3 [shape = 's32[2]{0}', space=sflag, size = 0x8, scoped, tag = 'scoped memory for tpu_custom_call.1']
    #allocation4 [shape = 's32[2]{0}', space=sflag, size = 0x8, scoped, tag = 'scoped memory for tpu_custom_call.1']
    #allocation5 [shape = 'u8[8192]{0}', space=vmem, size = 0x2000, scoped, tag = 'input window, operand 1']
    #allocation6 [shape = 's32[2]{0}', space=sflag, size = 0x8, scoped, tag = 'scoped memory for tpu_custom_call.1']
    #allocation7 [shape = 'u8[8192]{0}', space=vmem, size = 0x2000, scoped, tag = 'output window, operand 0']
    %7 = vsyncpa [#allocation3], 0
    %s8 = scalar_lea.sflag [#allocation3], 1
    %9 = vsyncpa %s8, 0
    %10 = vsyncpa [#allocation6], 0
    %s11 = scalar_lea.sflag [#allocation6], 1
    %12 = vsyncpa %s11, 0
    %13 = vsyncpa [#allocation4], 0
    %s14 = scalar_lea.sflag [#allocation4], 1
    %15 = vsyncpa %s14, 0
    loop: start=0, step=1, limit=4
    $region2: #{tpu_custom_call.1} parent=1 // loop_pre_header
      _
    $region3: #{tpu_custom_call.1} parent=1 // loop_header
      %s17 = sphi 0, %s21
      %p18 = scmp.ge.s32.totalorder %s17, 4
      %s24 = sphi 0, %s36
      %s25 = sphi 0, %s32
      %s26 = sphi 0, %s24
      %s27 = sphi 0, %s25
      %s28 = sphi 0, %s26
      %s29 = sphi 0, %s27
      %s41 = sphi 0, %s43
      %s44 = sphi 0, %s41
      %s45 = sphi 0, %s44
      %s61 = sphi 0, %s45
      %s69 = sphi 0, %s71
      %s72 = sphi 0, %s69
      %s73 = sphi 0, %s72
      %s89 = sphi 0, %s73
      %s95 = sphi 0, %s97
      %s98 = sphi 0, %s95
      %s99 = sphi 0, %s98
      %s115 = sphi 0, %s99
    $region4: #{tpu_custom_call.1} parent=1 // loop_header_branch
      %20 = sbr.rel (%p18) target = $region8
    $region5: #{tpu_custom_call.1} parent=1 // loop_body
      %s22 = ssub.s32 %s17, 1
      %s23 = ssub.s32 %s17, 2
      %s30 = sadd.s32 1, %s25
      %p31 = scmp.ge.s32.totalorder %s30, 1
      %s32 = scalar_select %p31, 0, %s30
      %s33 = sadd.s32 1, %s24
      %s34 = scalar_select %p31, %s33, %s24
      %p35 = scmp.ge.s32.totalorder %s34, 2
      %s36 = scalar_select %p35, 0, %s34
      %s37 = sadd.s32 %s24, %s25
      %s38 = sadd.s32 %s36, %s32
      %s39 = ssub.s32 %s37, %s38
      %p40 = scmp.eq.s32.totalorder %s39, 0
      %s42 = sadd.s32 %s41, 1
      %s43 = scalar_select %p40, %s41, %s42
      %p46 = pneg %p40
      %p47 = scmp.eq.s32.totalorder %s17, 1
      %p48 = por %p46, %p47
      %p49 = scmp.ne.s32.totalorder %s41, %s44
      %p50 = scmp.eq.s32.totalorder %s17, 0
      %p51 = por %p49, %p50
      %p52 = scmp.ne.s32.totalorder %s41, %s44
      %p53 = scmp.eq.s32.totalorder %s22, 1
      %p54 = por %p52, %p53
      %p55 = scmp.ne.s32.totalorder %s44, %s45
      %p56 = scmp.eq.s32.totalorder %s22, 0
      %p57 = por %p55, %p56
      %p58 = scmp.ne.s32.totalorder %s44, %s45
      %p59 = scmp.eq.s32.totalorder %s23, 1
      %p60 = por %p58, %p59
      %p62 = scmp.ne.s32.totalorder %s45, %s61
      %p63 = scmp.eq.s32.totalorder %s23, 0
      %p64 = por %p62, %p63
      %s65 = sadd.s32 %s24, %s25
      %s66 = sadd.s32 %s36, %s32
      %s67 = ssub.s32 %s65, %s66
      %p68 = scmp.eq.s32.totalorder %s67, 0
      %s70 = sadd.s32 %s69, 1
      %s71 = scalar_select %p68, %s69, %s70
      %p74 = pneg %p68
      %p75 = scmp.eq.s32.totalorder %s17, 1
      %p76 = por %p74, %p75
      %p77 = scmp.ne.s32.totalorder %s69, %s72
      %p78 = scmp.eq.s32.totalorder %s17, 0
      %p79 = por %p77, %p78
      %p80 = scmp.ne.s32.totalorder %s69, %s72
      %p81 = scmp.eq.s32.totalorder %s22, 1
      %p82 = por %p80, %p81
      %p83 = scmp.ne.s32.totalorder %s72, %s73
      %p84 = scmp.eq.s32.totalorder %s22, 0
      %p85 = por %p83, %p84
      %p86 = scmp.ne.s32.totalorder %s72, %s73
      %p87 = scmp.eq.s32.totalorder %s23, 1
      %p88 = por %p86, %p87
      %p90 = scmp.ne.s32.totalorder %s73, %s89
      %p91 = scmp.eq.s32.totalorder %s23, 0
      %p92 = por %p90, %p91
      %s93 = ssub.s32 %s24, %s36
      %p94 = scmp.eq.s32.totalorder %s93, 0
      %s96 = sadd.s32 %s95, 1
      %s97 = scalar_select %p94, %s95, %s96
      %p100 = pneg %p94
      %p101 = scmp.eq.s32.totalorder %s17, 1
      %p102 = por %p100, %p101
      %p103 = scmp.ne.s32.totalorder %s95, %s98
      %p104 = scmp.eq.s32.totalorder %s17, 0
      %p105 = por %p103, %p104
      %p106 = scmp.ne.s32.totalorder %s95, %s98
      %p107 = scmp.eq.s32.totalorder %s22, 1
      %p108 = por %p106, %p107
      %p109 = scmp.ne.s32.totalorder %s98, %s99
      %p110 = scmp.eq.s32.totalorder %s22, 0
      %p111 = por %p109, %p110
      %p112 = scmp.ne.s32.totalorder %s98, %s99
      %p113 = scmp.eq.s32.totalorder %s23, 1
      %p114 = por %p112, %p113
      %p116 = scmp.ne.s32.totalorder %s99, %s115
      %p117 = scmp.eq.s32.totalorder %s23, 0
      %p118 = por %p116, %p117
      %p119 = scmp.le.s32.totalorder 1, %s17
      %p120 = scmp.lt.s32.totalorder %s17, 3
      %p121 = pnand %p119, %p120
      %p122 = pneg %p121
      // Predicated region
      $region9: #{tpu_custom_call.1} parent=5 // pred_check
        _
      $region10: #{tpu_custom_call.1} parent=5 // pred_check_branch
        %124 = sbr.rel (%p121) target = $region12
      $region11: #{tpu_custom_call.1} parent=5 // pred_region
        %s125 = ssub.s32 %s17, 1
      $region12: #{tpu_custom_call.1} parent=5 // pred_fallthru
        _
      %p126 = scmp.lt.s32.totalorder %s17, 2
      // Predicated region
      $region13: #{tpu_custom_call.1} parent=5 // pred_check
        %p127 = pneg %p126
      $region14: #{tpu_custom_call.1} parent=5 // pred_check_branch
        %129 = sbr.rel (%p127) target = $region16
      $region15: #{tpu_custom_call.1} parent=5 // pred_region
        // Predicated region
        $region17: #{tpu_custom_call.1} parent=15 // pred_check
          %p130 = pneg %p51
        $region18: #{tpu_custom_call.1} parent=15 // pred_check_branch
          %132 = sbr.rel (%p130) target = $region20
        $region19: #{tpu_custom_call.1} parent=15 // pred_region
          %s133 = sand.u32 %s41, 1
          %s134 = scalar_lea.sflag [#allocation3], %s133
          %s135 = sand.u32 %s41, 1
          %s136 = smul.addr %s135, 32
          %s137 = scalar_lea.vmem [#allocation2], %s136
          %s138 = sadd.s32 %s24, %s25
          %s139 = smul.u32 4, %s138
          %s141 = ssub.s32 512, 512
          %142 = vsyncadd %s134, %s141
          %s143 = smul.addr %s139, 128
          %s144 = scalar_lea.hbm %s0, %s143
          %s145 = sshll.u32 %s137, 4
          %s146 = int_to_ptr.vmem [resolvable:$true] %s145
          %151 = dma.hbm_to_vmem [thread:$0]  %s144, 512, %s146, %s134, 128, 128, 8
        $region20: #{tpu_custom_call.1} parent=15 // pred_fallthru
          _
        // Predicated region
        $region21: #{tpu_custom_call.1} parent=15 // pred_check
          %p152 = pneg %p79
        $region22: #{tpu_custom_call.1} parent=15 // pred_check_branch
          %154 = sbr.rel (%p152) target = $region24
        $region23: #{tpu_custom_call.1} parent=15 // pred_region
          %s155 = sand.u32 %s69, 1
          %s156 = scalar_lea.sflag [#allocation6], %s155
          %s157 = sand.u32 %s69, 1
          %s158 = smul.addr %s157, 8
          %s159 = scalar_lea.vmem [#allocation5], %s158
          %s160 = sadd.s32 %s24, %s25
          %s162 = ssub.s32 128, 128
          %163 = vsyncadd %s156, %s162
          %s164 = smul.addr %s160, 128
          %s165 = scalar_lea.hbm %s1, %s164
          %s167 = sshll.u32 %s159, 4
          %s168 = int_to_ptr.vmem [resolvable:$true] %s167
          %170 = dma.hbm_to_vmem [thread:$0]  %s165, 128, %s168, %s156
        $region24: #{tpu_custom_call.1} parent=15 // pred_fallthru
          _
      $region16: #{tpu_custom_call.1} parent=5 // pred_fallthru
        _
      %p171 = scmp.le.s32.totalorder 1, %s17
      %p172 = scmp.lt.s32.totalorder %s17, 3
      %p173 = pnand %p171, %p172
      %p174 = pneg %p173
      // Predicated region
      $region25: #{tpu_custom_call.1} parent=5 // pred_check
        _
      $region26: #{tpu_custom_call.1} parent=5 // pred_check_branch
        %176 = sbr.rel (%p173) target = $region28
      $region27: #{tpu_custom_call.1} parent=5 // pred_region
        %s177 = ssub.s32 %s17, 1
        %s178 = sand.u32 %s44, 1
        %s179 = scalar_lea.sflag [#allocation3], %s178
        %s180 = sand.u32 %s44, 1
        %s181 = smul.addr %s180, 32
        %s182 = scalar_lea.vmem [#allocation2], %s181
        // Predicated region
        $region29: #{tpu_custom_call.1} parent=27 // pred_check
          %p183 = pneg %p57
        $region30: #{tpu_custom_call.1} parent=27 // pred_check_branch
          %185 = sbr.rel (%p183) target = $region32
        $region31: #{tpu_custom_call.1} parent=27 // pred_region
          %186 = dma.done %s179, 512
        $region32: #{tpu_custom_call.1} parent=27 // pred_fallthru
          _
        %s187 = sand.u32 %s72, 1
        %s188 = scalar_lea.sflag [#allocation6], %s187
        %s189 = sand.u32 %s72, 1
        %s190 = smul.addr %s189, 8
        %s191 = scalar_lea.vmem [#allocation5], %s190
        // Predicated region
        $region33: #{tpu_custom_call.1} parent=27 // pred_check
          %p192 = pneg %p85
        $region34: #{tpu_custom_call.1} parent=27 // pred_check_branch
          %194 = sbr.rel (%p192) target = $region36
        $region35: #{tpu_custom_call.1} parent=27 // pred_region
          %195 = dma.done %s188, 128
        $region36: #{tpu_custom_call.1} parent=27 // pred_fallthru
          _
        %s196 = sand.u32 %s44, 1
        %s197 = scalar_lea.sflag [#allocation3], %s196
        %s198 = sand.u32 %s44, 1
        %s199 = smul.addr %s198, 32
        %s200 = scalar_lea.vmem [#allocation2], %s199
        %p201 = pneg %p57
        %p202 = pneg %p54
        %s203 = sand.u32 %s72, 1
        %s204 = scalar_lea.sflag [#allocation6], %s203
        %s205 = sand.u32 %s72, 1
        %s206 = smul.addr %s205, 8
        %s207 = scalar_lea.vmem [#allocation5], %s206
        %p208 = pneg %p85
        %p209 = pneg %p82
        %p210 = pneg %p111
        %p211 = pneg %p108
        %s212 = sand.u32 %s98, 1
        %s213 = scalar_lea.sflag [#allocation4], %s212
        %s214 = sand.u32 %s98, 1
        %s215 = smul.addr %s214, 8
        %s216 = scalar_lea.vmem [#allocation7], %s215
        %s217 = sadd.s32 %s26, %s27
        %s218 = smul.u32 4, %s217
        %s219 = sadd.s32 %s26, %s27
        %p220 = scmp.eq.s32.totalorder %s27, 0
        // Predicated region
        $region37: #{tpu_custom_call.1} parent=27 // pred_check
          %p221 = pneg %p220
        $region38: #{tpu_custom_call.1} parent=27 // pred_check_branch
          %223 = sbr.rel (%p221) target = $region40
        $region39: #{tpu_custom_call.1} parent=27 // pred_region
          %224 = vst [vmem:[%s216] sm:$0xff] 0.0
        $region40: #{tpu_custom_call.1} parent=27 // pred_fallthru
          _
        %v225 = vld [vmem:[%s182] sm:$0xff]
        %v226 = vld [vmem:[%s182 + $0x8] sm:$0xff]
        %v227 = vld [vmem:[%s182 + $0x10] sm:$0xff]
        %v228 = vld [vmem:[%s182 + $0x18] sm:$0xff]
        %v229 = vld [vmem:[%s191] sm:$0xff]
        %v230 = vunpack.c.0.s8 %v229
        %v231 = vunpack.c.1.s8 %v229
        %v232 = vunpack.c.2.s8 %v229
        %v233 = vunpack.c.3.s8 %v229
        %v234 = vcvt.s32.f32 %v230
        %v235 = vcvt.s32.f32 %v231
        %v236 = vcvt.s32.f32 %v232
        %v237 = vcvt.s32.f32 %v233
        %v238 = vmax.f32 %v234, 0.0
        %v239 = vmax.f32 %v235, 0.0
        %v240 = vmax.f32 %v236, 0.0
        %v241 = vmax.f32 %v237, 0.0
        %v242 = vand.u32 2147483647, %v225
        %v243 = vand.u32 2147483647, %v226
        %v244 = vand.u32 2147483647, %v227
        %v245 = vand.u32 2147483647, %v228
        %v246 = vsub.f32 0.0, %v242
        %v247 = vsub.f32 0.0, %v243
        %v248 = vsub.f32 0.0, %v244
        %v249 = vsub.f32 0.0, %v245
        %v250 = vmul.f32 %v246, 1.442695
        %v251 = vpow.pop %v250
        %v252 = vmul.f32 %v247, 1.442695
        %v253 = vpow.pop %v252
        %v254 = vmul.f32 %v248, 1.442695
        %v255 = vpow.pop %v254
        %v256 = vmul.f32 %v249, 1.442695
        %v257 = vpow.pop %v256
        %v258 = vmax.f32 %v225, 0.0
        %v259 = vmax.f32 %v226, 0.0
        %v260 = vmax.f32 %v227, 0.0
        %v261 = vmax.f32 %v228, 0.0
        %v262 = vmul.f32 %v225, %v238
        %v263 = vmul.f32 %v226, %v239
        %v264 = vmul.f32 %v227, %v240
        %v265 = vmul.f32 %v228, %v241
        %v266 = vsub.f32 %v258, %v262
        %v267 = vsub.f32 %v259, %v263
        %v268 = vsub.f32 %v260, %v264
        %v269 = vsub.f32 %v261, %v265
        %v270 = vadd.f32 %v251, 1.0
        %v271 = vlog2.pop %v270
        %v272 = vmul.f32 %v271, 0.6931472
        %v273 = vmul.f32 -0.5, %v251
        %v274 = vadd.f32 %v273, 1.0
        %v275 = vmul.f32 %v274, %v251
        %v276 = vand.u32 2147483647, %v251
        %vm277 = vcmp.lt.f32.partialorder %v276, 0.0004427343
        %v278 = vsel %vm277, %v275, %v272
        %v279 = vadd.f32 %v253, 1.0
        %v280 = vlog2.pop %v279
        %v281 = vmul.f32 %v280, 0.6931472
        %v282 = vmul.f32 -0.5, %v253
        %v283 = vadd.f32 %v282, 1.0
        %v284 = vmul.f32 %v283, %v253
        %v285 = vand.u32 2147483647, %v253
        %vm286 = vcmp.lt.f32.partialorder %v285, 0.0004427343
        %v287 = vsel %vm286, %v284, %v281
        %v288 = vadd.f32 %v255, 1.0
        %v289 = vlog2.pop %v288
        %v290 = vmul.f32 %v289, 0.6931472
        %v291 = vmul.f32 -0.5, %v255
        %v292 = vadd.f32 %v291, 1.0
        %v293 = vmul.f32 %v292, %v255
        %v294 = vand.u32 2147483647, %v255
        %vm295 = vcmp.lt.f32.partialorder %v294, 0.0004427343
        %v296 = vsel %vm295, %v293, %v290
        %v297 = vadd.f32 %v257, 1.0
        %v298 = vlog2.pop %v297
        %v299 = vmul.f32 %v298, 0.6931472
        %v300 = vmul.f32 -0.5, %v257
        %v301 = vadd.f32 %v300, 1.0
        %v302 = vmul.f32 %v301, %v257
        %v303 = vand.u32 2147483647, %v257
        %vm304 = vcmp.lt.f32.partialorder %v303, 0.0004427343
        %v305 = vsel %vm304, %v302, %v299
        %v306 = vadd.f32 %v266, %v278
        %v307 = vadd.f32 %v267, %v287
        %v308 = vadd.f32 %v268, %v296
        %v309 = vadd.f32 %v269, %v305
        %v310 = vsub.f32 0.0, %v306
        %v311 = vsub.f32 0.0, %v307
        %v312 = vsub.f32 0.0, %v308
        %v313 = vsub.f32 0.0, %v309
        %v314 = vmul.f32 %v310, 1.442695
        %v315 = vpow.pop %v314
        %v316 = vmul.f32 %v311, 1.442695
        %v317 = vpow.pop %v316
        %v318 = vmul.f32 %v312, 1.442695
        %v319 = vpow.pop %v318
        %v320 = vmul.f32 %v313, 1.442695
        %v321 = vpow.pop %v320
        %v322 = vsub.f32 1.0, %v315
        %v323 = vsub.f32 1.0, %v317
        %v324 = vsub.f32 1.0, %v319
        %v325 = vsub.f32 1.0, %v321
        %v326 = vmul.f32 %v322, %v322
        %v327 = vmul.f32 %v323, %v323
        %v328 = vmul.f32 %v324, %v324
        %v329 = vmul.f32 %v325, %v325
        %v330 = vmul.f32 %v238, -0.5
        %v331 = vmul.f32 %v239, -0.5
        %v332 = vmul.f32 %v240, -0.5
        %v333 = vmul.f32 %v241, -0.5
        %v334 = vadd.f32 %v330, 0.75
        %v335 = vadd.f32 %v331, 0.75
        %v336 = vadd.f32 %v332, 0.75
        %v337 = vadd.f32 %v333, 0.75
        %vm338 = vcmp.ge.f32.partialorder %v234, 0.0
        %vm339 = vcmp.ge.f32.partialorder %v235, 0.0
        %vm340 = vcmp.ge.f32.partialorder %v236, 0.0
        %vm341 = vcmp.ge.f32.partialorder %v237, 0.0
        %v342 = vmul.f32 %v326, %v334
        %v343 = vmul.f32 %v327, %v335
        %v344 = vmul.f32 %v328, %v336
        %v345 = vmul.f32 %v329, %v337
        %v346 = vmul.f32 %v342, %v306
        %v347 = vmul.f32 %v343, %v307
        %v348 = vmul.f32 %v344, %v308
        %v349 = vmul.f32 %v345, %v309
        %v350 = vsel %vm338, %v346, 0.0
        %v351 = vsel %vm339, %v347, 0.0
        %v352 = vsel %vm340, %v348, 0.0
        %v353 = vsel %vm341, %v349, 0.0
        %v354 = vld [vmem:[%s216] sm:$0xff]
        %v355 = vadd.f32 %v350, %v351
        %v356 = vadd.f32 %v355, %v352
        %v357 = vadd.f32 %v356, %v353
        %v358 = vadd.f32 %v354, %v357
        %359 = vst [vmem:[%s216] sm:$0xff] %v358
        %s360 = sand.u32 %s98, 1
        %s361 = scalar_lea.sflag [#allocation4], %s360
        %s362 = sand.u32 %s98, 1
        %s363 = smul.addr %s362, 8
        %s364 = scalar_lea.vmem [#allocation7], %s363
        // Predicated region
        $region41: #{tpu_custom_call.1} parent=27 // pred_check
          %p365 = pneg %p108
        $region42: #{tpu_custom_call.1} parent=27 // pred_check_branch
          %367 = sbr.rel (%p365) target = $region44
        $region43: #{tpu_custom_call.1} parent=27 // pred_region
          %s369 = ssub.s32 128, 128
          %370 = vsyncadd %s361, %s369
          %s371 = smul.addr %s26, 128
          %s372 = scalar_lea.hbm %s2, %s371
          %s374 = sshll.u32 %s364, 4
          %s375 = int_to_ptr.vmem [resolvable:$true] %s374
          %377 = dma.vmem_to_hbm [thread:$0]  %s375, 128, %s372, %s361
        $region44: #{tpu_custom_call.1} parent=27 // pred_fallthru
          _
      $region28: #{tpu_custom_call.1} parent=5 // pred_fallthru
        _
      %p378 = scmp.le.s32.totalorder 2, %s17
      // Predicated region
      $region45: #{tpu_custom_call.1} parent=5 // pred_check
        %p379 = pneg %p378
      $region46: #{tpu_custom_call.1} parent=5 // pred_check_branch
        %381 = sbr.rel (%p379) target = $region48
      $region47: #{tpu_custom_call.1} parent=5 // pred_region
        %s382 = ssub.s32 %s17, 2
        // Predicated region
        $region49: #{tpu_custom_call.1} parent=47 // pred_check
          %p383 = pneg %p114
        $region50: #{tpu_custom_call.1} parent=47 // pred_check_branch
          %385 = sbr.rel (%p383) target = $region52
        $region51: #{tpu_custom_call.1} parent=47 // pred_region
          %s386 = sand.u32 %s99, 1
          %s387 = scalar_lea.sflag [#allocation4], %s386
          %s388 = sand.u32 %s99, 1
          %s389 = smul.addr %s388, 8
          %s390 = scalar_lea.vmem [#allocation7], %s389
          %391 = dma.done %s387, 128
        $region52: #{tpu_custom_call.1} parent=47 // pred_fallthru
          _
      $region48: #{tpu_custom_call.1} parent=5 // pred_fallthru
        _
    $region6: #{tpu_custom_call.1} parent=1 // loop_footer
      %s21 = sadd.s32 1, %s17
    $region7: #{tpu_custom_call.1} parent=1 // loop_footer_branch
      %16 = sbr.rel target = $region3
    $region8: #{tpu_custom_call.1} parent=1 // loop_exit
      _
    %392 = vsyncpa [#allocation3], 1
    %s393 = scalar_lea.sflag [#allocation3], 1
    %394 = vsyncpa %s393, 1
    %395 = vsyncpa [#allocation6], 1
    %s396 = scalar_lea.sflag [#allocation6], 1
    %397 = vsyncpa %s396, 1
    %398 = vsyncpa [#allocation4], 1
    %s399 = scalar_lea.sflag [#allocation4], 1
    %400 = vsyncpa %s399, 1

</llo_original>
